<compile_context>
chip_gen: v5e
topology: v5e:2x2
jax: 0.10.0
libtpu: 0.0.40
codegen_flags: <defaults>
</compile_context>

<pallas_src>
import functools

import jax
import jax.numpy as jnp
from jax import lax
from jax.experimental import pallas as pl
from jax.experimental.pallas import tpu as pltpu

RMS_EPS = 1e-6  # Qwen2 RMSNorm epsilon


def _lm_head_kernel(x_ref, g_ref, w_ref, o_ref, *, eps):
    # --- Qwen2RMSNorm (torch: f32 variance, rsqrt, cast back, * weight) ---
    x = x_ref[...].astype(jnp.float32)                       # (B, H)
    var = jnp.mean(x * x, axis=-1, keepdims=True)            # (B, 1)
    xn = x * lax.rsqrt(var + eps)                            # (B, H) f32
    xn = xn.astype(x_ref.dtype) * g_ref[...]                 # weight * x.to(input_dtype)

    # --- lm_head matvec for this vocab tile (weights stream via the grid) ---
    o_ref[...] = jnp.dot(xn.astype(w_ref.dtype), w_ref[...],
                         preferred_element_type=jnp.float32).astype(o_ref.dtype)


def lm_head(hidden_states, norm_weight, lm_head_weight_t, *,
            eps=RMS_EPS, block_v=None):
    """Fused RMSNorm + lm_head projection.

    hidden_states:     (B, H) float
    norm_weight:       (H,)   RMSNorm gamma
    lm_head_weight_t:  (H, V) lm_head weight stored K-major
                       (== torch `lm_head.weight.T`, transposed once at load).
    Returns m_logits of shape (B, V) in hidden_states.dtype.
    """
    B, H = hidden_states.shape
    Hw, V = lm_head_weight_t.shape
    assert Hw == H, (Hw, H)
    assert norm_weight.shape == (H,)
    assert V >= 128 and V % 128 == 0, "vocab must be lane-aligned (multiple of 128)"

    if block_v is None:
        # Largest lane-aligned tile whose double-buffered weight slab stays
        # comfortably inside default scoped VMEM on v5e/v6e/v7x.
        itemsize = jnp.dtype(lm_head_weight_t.dtype).itemsize
        budget = 12 * 1024 * 1024
        block_v = 2048
        while block_v > 128 and 2 * H * block_v * itemsize > budget:
            block_v //= 2
        block_v = min(block_v, V)
    assert block_v % 128 == 0

    grid = (pl.cdiv(V, block_v),)
    gamma2d = norm_weight.reshape(1, H)

    kernel = functools.partial(_lm_head_kernel, eps=eps)
    return pl.pallas_call(
        kernel,
        out_shape=jax.ShapeDtypeStruct((B, V), hidden_states.dtype),
        grid=grid,
        in_specs=[
            pl.BlockSpec((B, H), lambda j: (0, 0)),           # hidden (resident)
            pl.BlockSpec((1, H), lambda j: (0, 0)),           # RMSNorm gamma (resident)
            pl.BlockSpec((H, block_v), lambda j: (0, j)),     # weight tile (streamed)
        ],
        out_specs=pl.BlockSpec((B, block_v), lambda j: (0, j)),
        compiler_params=pltpu.CompilerParams(
            dimension_semantics=("parallel",)),
    )(hidden_states, gamma2d, lm_head_weight_t)


def _reference(hidden_states, norm_weight, lm_head_weight_t, eps=RMS_EPS):
    """Pure-JAX reference mirroring the PyTorch forward."""
    x = hidden_states.astype(jnp.float32)
    var = jnp.mean(x * x, axis=-1, keepdims=True)
    xn = x * jax.lax.rsqrt(var + eps)
    xn = xn.astype(hidden_states.dtype) * norm_weight[None, :]
    out = jnp.dot(xn.astype(lm_head_weight_t.dtype), lm_head_weight_t,
                  preferred_element_type=jnp.float32)
    return out.astype(hidden_states.dtype)


if __name__ == "__main__":
    key = jax.random.PRNGKey(0)
    # Small shapes consistent with the module (real Qwen2-VL: H=3584, V=152064).
    B, H, V = 1, 128, 1024
    k1, k2, k3 = jax.random.split(key, 3)
    hidden = jax.random.normal(k1, (B, H), jnp.float32)
    gamma = 1.0 + 0.1 * jax.random.normal(k2, (H,), jnp.float32)
    w_t = 0.02 * jax.random.normal(k3, (H, V), jnp.float32)   # == lm_head.weight.T

    logits = lm_head(hidden, gamma, w_t, block_v=256)         # 4 vocab tiles
    jax.block_until_ready(logits)

    ref = _reference(hidden, gamma, w_t)
    assert logits.shape == (B, V)
    max_err = float(jnp.max(jnp.abs(logits - ref)))
    # Loose tolerance: MXU f32 matmuls at default precision use bf16 passes.
    assert max_err < 1e-2, max_err
    print("KERNEL_OK")
</pallas_src>

<mosaic_0001>
module attributes {stable_mosaic.version = 11 : i64} {
  func.func @_lm_head_kernel(%arg0: i32, %arg1: memref<1x128xf32, #tpu.memory_space<vmem>>, %arg2: memref<1x128xf32, #tpu.memory_space<vmem>>, %arg3: memref<128x256xf32, #tpu.memory_space<vmem>>, %arg4: memref<1x256xf32, #tpu.memory_space<vmem>>) attributes {dimension_semantics = [#tpu.dimension_semantics<parallel>], iteration_bounds = array<i64: 4>, scalar_prefetch = 0 : i64, scratch_operands = 0 : i64, tpu.core_type = #tpu.core_type<tc>, window_params = [{pipeline_mode = #tpu.pipeline_mode<synchronous>, transform_indices = @transform_0, window_bounds = array<i64: 1, 128>}, {pipeline_mode = #tpu.pipeline_mode<synchronous>, transform_indices = @transform_1, window_bounds = array<i64: 1, 128>}, {transform_indices = @transform_2, window_bounds = array<i64: 128, 256>}, {transform_indices = @transform_3, window_bounds = array<i64: 1, 256>}]} {
    %c0 = arith.constant 0 : index
    %c0_0 = arith.constant 0 : index
    %0 = vector.load %arg1[%c0, %c0_0] : memref<1x128xf32, #tpu.memory_space<vmem>>, vector<1x128xf32>
    %1 = arith.mulf %0, %0 : vector<1x128xf32>
    %cst = arith.constant dense<0.000000e+00> : vector<1xf32>
    %2 = vector.multi_reduction <add>, %1, %cst [1] : vector<1x128xf32> to vector<1xf32>
    %3 = vector.shape_cast %2 : vector<1xf32> to vector<1x1xf32>
    %cst_1 = arith.constant 1.280000e+02 : f32
    %4 = vector.broadcast %cst_1 : f32 to vector<1x1xf32>
    %5 = arith.divf %3, %4 : vector<1x1xf32>
    %cst_2 = arith.constant 9.99999997E-7 : f32
    %6 = vector.broadcast %cst_2 : f32 to vector<1x1xf32>
    %7 = arith.addf %5, %6 : vector<1x1xf32>
    %8 = math.rsqrt %7 : vector<1x1xf32>
    %9 = vector.broadcast %8 : vector<1x1xf32> to vector<1x128xf32>
    %10 = arith.mulf %0, %9 : vector<1x128xf32>
    %c0_3 = arith.constant 0 : index
    %c0_4 = arith.constant 0 : index
    %11 = vector.load %arg2[%c0_3, %c0_4] : memref<1x128xf32, #tpu.memory_space<vmem>>, vector<1x128xf32>
    %12 = arith.mulf %10, %11 : vector<1x128xf32>
    %c0_5 = arith.constant 0 : index
    %c0_6 = arith.constant 0 : index
    %13 = vector.load %arg3[%c0_5, %c0_6] : memref<128x256xf32, #tpu.memory_space<vmem>>, vector<128x256xf32>
    %cst_7 = arith.constant dense<0.000000e+00> : vector<1x256xf32>
    %14 = tpu.matmul %12, %13, %cst_7 {dimension_numbers = #tpu.dot_dimension_numbers<[1], [0], [0], [1], [0, 0, 1, 1], [], []>} : vector<1x128xf32>, vector<128x256xf32>, vector<1x256xf32> -> vector<1x256xf32>
    %c0_8 = arith.constant 0 : index
    %c0_9 = arith.constant 0 : index
    %15 = vector.load %arg4[%c0_8, %c0_9] : memref<1x256xf32, #tpu.memory_space<vmem>>, vector<1x256xf32>
    tpu.vector_store %arg4[%c0_8, %c0_9], %14 {strides = array<i32>} : memref<1x256xf32, #tpu.memory_space<vmem>>, vector<1x256xf32>,
    return
  }
  func.func @transform_0(%arg0: i32) -> (i32, i32) {
    %c0_i32 = arith.constant 0 : i32
    %c0_i32_0 = arith.constant 0 : i32
    %c0_i32_1 = arith.constant 0 : i32
    return %c0_i32, %c0_i32_0 : i32, i32
  }
  func.func @transform_1(%arg0: i32) -> (i32, i32) {
    %c0_i32 = arith.constant 0 : i32
    %c0_i32_0 = arith.constant 0 : i32
    %c0_i32_1 = arith.constant 0 : i32
    return %c0_i32, %c0_i32_0 : i32, i32
  }
  func.func @transform_2(%arg0: i32) -> (i32, i32) {
    %c0_i32 = arith.constant 0 : i32
    %c0_i32_0 = arith.constant 0 : i32
    return %c0_i32, %arg0 : i32, i32
  }
  func.func @transform_3(%arg0: i32) -> (i32, i32) {
    %c0_i32 = arith.constant 0 : i32
    %c0_i32_0 = arith.constant 0 : i32
    return %c0_i32, %arg0 : i32, i32
  }
}

</mosaic_0001>

<llo_original>
// kernel: tpu_custom_call.1
$region0: #{tpu_custom_call.1}
  #allocation0 [shape = 'u32[]', space=smem, size = 0x4, offset = 0x4, fixed_abs, tag = 'smem constant byte address 0x4 - core index']
  #allocation1 [shape = 'u32[72,128]{1,0:T(1,128)}', space=vmem, size = 0x9000, scoped, tag = 'internal scratch']
  %s0 = inlined_call_operand.hbm [shape: f32[1,128], index: 0, kind: input, shape index: {}]
  %s1 = inlined_call_operand.hbm [shape: f32[1,128], index: 1, kind: input, shape index: {}]
  %s2 = inlined_call_operand.hbm [shape: f32[128,1024], index: 2, kind: input, shape index: {}]
  %s3 = inlined_call_operand.hbm [shape: f32[1,1024], index: 3, kind: output, shape index: {}]
  %s4 = sld [smem:[#allocation0]]
  $region57: #{tpu_custom_call.1} parent=0
    _
  %s6 = ssub.s32 1, %s4
  %s7 = scalar_select 0, %s6, %s4
  $region1: #{tpu_custom_call.1} parent=0
    #allocation2 [shape = 'u8[512]{0}', space=vmem, size = 0x400, scoped, tag = 'input window, operand 0, single buffered']
    #allocation3 [shape = 's32[2]{0}', space=sflag, size = 0x8, scoped, tag = 'scoped memory for tpu_custom_call.1']
    #allocation4 [shape = 's32[2]{0}', space=sflag, size = 0x8, scoped, tag = 'scoped memory for tpu_custom_call.1']
    #allocation5 [shape = 'u8[512]{0}', space=vmem, size = 0x400, scoped, tag = 'input window, operand 1, single buffered']
    #allocation6 [shape = 's32[1]{0}', space=sflag, size = 0x4, scoped, tag = 'scoped memory for tpu_custom_call.1']
    #allocation7 [shape = 'u8[262144]{0}', space=vmem, size = 0x40000, scoped, tag = 'input window, operand 2']
    #allocation8 [shape = 'u8[2048]{0}', space=vmem, size = 0x800, scoped, tag = 'output window, operand 0']
    %8 = vsyncpa [#allocation3], 0
    %9 = vsyncpa [#allocation6], 0
    %10 = vsyncpa [#allocation4], 0
    %s11 = scalar_lea.sflag [#allocation4], 1
    %12 = vsyncpa %s11, 0
    loop: start=0, step=1, limit=6
    $region2: #{tpu_custom_call.1} parent=1 // loop_pre_header
      _
    $region3: #{tpu_custom_call.1} parent=1 // loop_header
      %s14 = sphi 0, %s18
      %p15 = scmp.ge.s32.totalorder %s14, 6
      %s22 = sphi 0, %s22
      %s24 = sphi 0, %s22
      %s25 = sphi 0, %s24
      %s39 = sphi 0, %s25
      %s43 = sphi 0, %s43
      %s45 = sphi 0, %s43
      %s46 = sphi 0, %s45
      %s60 = sphi 0, %s46
      %s66 = sphi 0, %s68
      %s69 = sphi 0, %s66
      %s70 = sphi 0, %s69
      %s86 = sphi 0, %s70
      %s92 = sphi 0, %s94
      %s95 = sphi 0, %s92
      %s96 = sphi 0, %s95
      %s112 = sphi 0, %s96
    $region4: #{tpu_custom_call.1} parent=1 // loop_header_branch
      %17 = sbr.rel (%p15) target = $region8
    $region5: #{tpu_custom_call.1} parent=1 // loop_body
      %s19 = ssub.s32 %s14, 1
      %s20 = ssub.s32 %s14, 2
      %s21 = sadd.s32 %s14, 1
      %s23 = sadd.s32 %s22, 1
      %p26 = scmp.eq.s32.totalorder %s14, 3
      %p27 = scmp.ne.s32.totalorder %s22, %s24
      %p28 = scmp.eq.s32.totalorder %s14, 0
      %p29 = por %p27, %p28
      %p30 = scmp.ne.s32.totalorder %s22, %s24
      %p31 = scmp.eq.s32.totalorder %s19, 3
      %p32 = por %p30, %p31
      %p33 = scmp.ne.s32.totalorder %s24, %s25
      %p34 = scmp.eq.s32.totalorder %s19, 0
      %p35 = por %p33, %p34
      %p36 = scmp.ne.s32.totalorder %s24, %s25
      %p37 = scmp.eq.s32.totalorder %s20, 3
      %p38 = por %p36, %p37
      %p40 = scmp.ne.s32.totalorder %s25, %s39
      %p41 = scmp.eq.s32.totalorder %s20, 0
      %p42 = por %p40, %p41
      %s44 = sadd.s32 %s43, 1
      %p47 = scmp.eq.s32.totalorder %s14, 3
      %p48 = scmp.ne.s32.totalorder %s43, %s45
      %p49 = scmp.eq.s32.totalorder %s14, 0
      %p50 = por %p48, %p49
      %p51 = scmp.ne.s32.totalorder %s43, %s45
      %p52 = scmp.eq.s32.totalorder %s19, 3
      %p53 = por %p51, %p52
      %p54 = scmp.ne.s32.totalorder %s45, %s46
      %p55 = scmp.eq.s32.totalorder %s19, 0
      %p56 = por %p54, %p55
      %p57 = scmp.ne.s32.totalorder %s45, %s46
      %p58 = scmp.eq.s32.totalorder %s20, 3
      %p59 = por %p57, %p58
      %p61 = scmp.ne.s32.totalorder %s46, %s60
      %p62 = scmp.eq.s32.totalorder %s20, 0
      %p63 = por %p61, %p62
      %s64 = ssub.s32 %s14, %s21
      %p65 = scmp.eq.s32.totalorder %s64, 0
      %s67 = sadd.s32 %s66, 1
      %s68 = scalar_select %p65, %s66, %s67
      %p71 = pneg %p65
      %p72 = scmp.eq.s32.totalorder %s14, 3
      %p73 = por %p71, %p72
      %p74 = scmp.ne.s32.totalorder %s66, %s69
      %p75 = scmp.eq.s32.totalorder %s14, 0
      %p76 = por %p74, %p75
      %p77 = scmp.ne.s32.totalorder %s66, %s69
      %p78 = scmp.eq.s32.totalorder %s19, 3
      %p79 = por %p77, %p78
      %p80 = scmp.ne.s32.totalorder %s69, %s70
      %p81 = scmp.eq.s32.totalorder %s19, 0
      %p82 = por %p80, %p81
      %p83 = scmp.ne.s32.totalorder %s69, %s70
      %p84 = scmp.eq.s32.totalorder %s20, 3
      %p85 = por %p83, %p84
      %p87 = scmp.ne.s32.totalorder %s70, %s86
      %p88 = scmp.eq.s32.totalorder %s20, 0
      %p89 = por %p87, %p88
      %s90 = ssub.s32 %s14, %s21
      %p91 = scmp.eq.s32.totalorder %s90, 0
      %s93 = sadd.s32 %s92, 1
      %s94 = scalar_select %p91, %s92, %s93
      %p97 = pneg %p91
      %p98 = scmp.eq.s32.totalorder %s14, 3
      %p99 = por %p97, %p98
      %p100 = scmp.ne.s32.totalorder %s92, %s95
      %p101 = scmp.eq.s32.totalorder %s14, 0
      %p102 = por %p100, %p101
      %p103 = scmp.ne.s32.totalorder %s92, %s95
      %p104 = scmp.eq.s32.totalorder %s19, 3
      %p105 = por %p103, %p104
      %p106 = scmp.ne.s32.totalorder %s95, %s96
      %p107 = scmp.eq.s32.totalorder %s19, 0
      %p108 = por %p106, %p107
      %p109 = scmp.ne.s32.totalorder %s95, %s96
      %p110 = scmp.eq.s32.totalorder %s20, 3
      %p111 = por %p109, %p110
      %p113 = scmp.ne.s32.totalorder %s96, %s112
      %p114 = scmp.eq.s32.totalorder %s20, 0
      %p115 = por %p113, %p114
      %p116 = scmp.le.s32.totalorder 1, %s14
      %p117 = scmp.lt.s32.totalorder %s14, 5
      %p118 = pnand %p116, %p117
      %p119 = pneg %p118
      // Predicated region
      $region9: #{tpu_custom_call.1} parent=5 // pred_check
        _
      $region10: #{tpu_custom_call.1} parent=5 // pred_check_branch
        %121 = sbr.rel (%p118) target = $region12
      $region11: #{tpu_custom_call.1} parent=5 // pred_region
        %s122 = ssub.s32 %s14, 1
        // Predicated region
        $region13: #{tpu_custom_call.1} parent=11 // pred_check
          %p123 = pneg %p35
        $region14: #{tpu_custom_call.1} parent=11 // pred_check_branch
          %125 = sbr.rel (%p123) target = $region16
        $region15: #{tpu_custom_call.1} parent=11 // pred_region
          %127 = vsyncadd [#allocation3], 0
          %s129 = sshll.u32 %s0, 4
          %s130 = int_to_ptr.hbm [resolvable:$true] %s129
          %s131 = sshll.u32 [#allocation2], 4
          %s132 = int_to_ptr.vmem [resolvable:$true] %s131
          %134 = dma.hbm_to_vmem [thread:$0]  %s130, 16, %s132, [#allocation3]
        $region16: #{tpu_custom_call.1} parent=11 // pred_fallthru
          _
        // Predicated region
        $region17: #{tpu_custom_call.1} parent=11 // pred_check
          %p135 = pneg %p56
        $region18: #{tpu_custom_call.1} parent=11 // pred_check_branch
          %137 = sbr.rel (%p135) target = $region20
        $region19: #{tpu_custom_call.1} parent=11 // pred_region
          %139 = vsyncadd [#allocation6], 0
          %s141 = sshll.u32 %s1, 4
          %s142 = int_to_ptr.hbm [resolvable:$true] %s141
          %s143 = sshll.u32 [#allocation5], 4
          %s144 = int_to_ptr.vmem [resolvable:$true] %s143
          %146 = dma.hbm_to_vmem [thread:$0]  %s142, 16, %s144, [#allocation6]
        $region20: #{tpu_custom_call.1} parent=11 // pred_fallthru
          _
      $region12: #{tpu_custom_call.1} parent=5 // pred_fallthru
        _
      %p147 = scmp.lt.s32.totalorder %s14, 4
      // Predicated region
      $region21: #{tpu_custom_call.1} parent=5 // pred_check
        %p148 = pneg %p147
      $region22: #{tpu_custom_call.1} parent=5 // pred_check_branch
        %150 = sbr.rel (%p148) target = $region24
      $region23: #{tpu_custom_call.1} parent=5 // pred_region
        // Predicated region
        $region25: #{tpu_custom_call.1} parent=23 // pred_check
          %p151 = pneg %p76
        $region26: #{tpu_custom_call.1} parent=23 // pred_check_branch
          %153 = sbr.rel (%p151) target = $region28
        $region27: #{tpu_custom_call.1} parent=23 // pred_region
          %s154 = sand.u32 %s14, 1
          %s155 = scalar_lea.sflag [#allocation3], %s154
          %s156 = sand.u32 %s66, 1
          %s157 = smul.addr %s156, 256
          %s158 = scalar_lea.vmem [#allocation7], %s157
          %s159 = smul.u32 2, %s14
          %161 = vsyncadd %s155, 0
          %s162 = smul.addr %s159, 8
          %s163 = scalar_lea.hbm %s2, %s162
          %s164 = sshll.u32 %s163, 4
          %s165 = int_to_ptr.hbm [resolvable:$true] %s164
          %s166 = sshll.u32 %s158, 4
          %s167 = int_to_ptr.vmem [resolvable:$true] %s166
          %172 = dma.hbm_to_vmem [thread:$0]  %s165, 4096, %s167, %s155, 1024, 256, 16
        $region28: #{tpu_custom_call.1} parent=23 // pred_fallthru
          _
      $region24: #{tpu_custom_call.1} parent=5 // pred_fallthru
        _
      %p173 = scmp.le.s32.totalorder 1, %s14
      %p174 = scmp.lt.s32.totalorder %s14, 5
      %p175 = pnand %p173, %p174
      %p176 = pneg %p175
      // Predicated region
      $region29: #{tpu_custom_call.1} parent=5 // pred_check
        _
      $region30: #{tpu_custom_call.1} parent=5 // pred_check_branch
        %178 = sbr.rel (%p175) target = $region32
      $region31: #{tpu_custom_call.1} parent=5 // pred_region
        %s179 = ssub.s32 %s14, 1
        // Predicated region
        $region33: #{tpu_custom_call.1} parent=31 // pred_check
          %p180 = pneg %p35
        $region34: #{tpu_custom_call.1} parent=31 // pred_check_branch
          %182 = sbr.rel (%p180) target = $region36
        $region35: #{tpu_custom_call.1} parent=31 // pred_region
          %184 = dma.done [#allocation3], 16
        $region36: #{tpu_custom_call.1} parent=31 // pred_fallthru
          _
        // Predicated region
        $region37: #{tpu_custom_call.1} parent=31 // pred_check
          %p185 = pneg %p56
        $region38: #{tpu_custom_call.1} parent=31 // pred_check_branch
          %187 = sbr.rel (%p185) target = $region40
        $region39: #{tpu_custom_call.1} parent=31 // pred_region
          %189 = dma.done [#allocation6], 16
        $region40: #{tpu_custom_call.1} parent=31 // pred_fallthru
          _
        %s190 = sand.u32 %s19, 1
        %s191 = scalar_lea.sflag [#allocation3], %s190
        %s192 = sand.u32 %s69, 1
        %s193 = smul.addr %s192, 256
        %s194 = scalar_lea.vmem [#allocation7], %s193
        // Predicated region
        $region41: #{tpu_custom_call.1} parent=31 // pred_check
          %p195 = pneg %p82
        $region42: #{tpu_custom_call.1} parent=31 // pred_check_branch
          %197 = sbr.rel (%p195) target = $region44
        $region43: #{tpu_custom_call.1} parent=31 // pred_region
          %199 = dma.done %s191, 4096
        $region44: #{tpu_custom_call.1} parent=31 // pred_fallthru
          _
        %p200 = pneg %p35
        %p201 = pneg %p32
        %p202 = pneg %p56
        %p203 = pneg %p53
        %s204 = sand.u32 %s19, 1
        %s205 = scalar_lea.sflag [#allocation3], %s204
        %s206 = sand.u32 %s69, 1
        %s207 = smul.addr %s206, 256
        %s208 = scalar_lea.vmem [#allocation7], %s207
        %p209 = pneg %p82
        %p210 = pneg %p79
        %p211 = pneg %p108
        %p212 = pneg %p105
        %s213 = sand.u32 %s95, 1
        %s214 = scalar_lea.sflag [#allocation4], %s213
        %s215 = sand.u32 %s95, 1
        %s216 = smul.addr %s215, 2
        %s217 = scalar_lea.vmem [#allocation8], %s216
        %s218 = smul.u32 2, %s19
        %s219 = smul.u32 2, %s19
        %v220 = vld [vmem:[#allocation2] sm:$0x1]
        %v221 = vmul.f32 %v220, %v220
        %vm222 = vcmask 1040384
        %v223 = vsel %vm222, %v221, 0.0
        %224 = vadd.xlane.f32.xlu0 %v223
        %v225 = vpop.xlane.xlu0 %224
        %v226 = vrcp.pop 128.0
        %v227 = vmul.f32 128.0, %v226
        %v228 = vsub.f32 1.0, %v227
        %v229 = vmul.f32 %v226, %v228
        %v230 = vadd.f32 %v226, %v229
        %vm231 = vweird.f32 %v226
        %v232 = vsel %vm231, %v226, %v230
        %v233 = vmul.f32 %v225, %v232
        %v234 = vadd.f32 %v233, 1e-06
        %v235 = vrsqrt.pop %v234
        %v236 = vmul.f32 %v235, %v234
        %v237 = vmul.f32 %v236, %v235
        %v238 = vmul.f32 0.5, %v237
        %v239 = vsub.f32 1.5, %v238
        %v240 = vmul.f32 %v235, %v239
        %vm241 = vweird.f32 %v234
        %vm242 = vweird.f32 %v235
        %vm243 = vmor %vm241, %vm242
        %v244 = vsel %vm243, %v235, %v240
        %v245 = vmul.f32 %v220, %v244
        %v246 = vld [vmem:[#allocation5] sm:$0x1]
        %v247 = vmul.f32 %v245, %v246
        %v248 = vld [vmem:[%s194] sm:$0xff]
        %v249 = vld [vmem:[%s194 + $0x8] sm:$0xff]
        %v250 = vld [vmem:[%s194 + $0x10] sm:$0xff]
        %v251 = vld [vmem:[%s194 + $0x18] sm:$0xff]
        %v252 = vld [vmem:[%s194 + $0x20] sm:$0xff]
        %v253 = vld [vmem:[%s194 + $0x28] sm:$0xff]
        %v254 = vld [vmem:[%s194 + $0x30] sm:$0xff]
        %v255 = vld [vmem:[%s194 + $0x38] sm:$0xff]
        %v256 = vld [vmem:[%s194 + $0x40] sm:$0xff]
        %v257 = vld [vmem:[%s194 + $0x48] sm:$0xff]
        %v258 = vld [vmem:[%s194 + $0x50] sm:$0xff]
        %v259 = vld [vmem:[%s194 + $0x58] sm:$0xff]
        %v260 = vld [vmem:[%s194 + $0x60] sm:$0xff]
        %v261 = vld [vmem:[%s194 + $0x68] sm:$0xff]
        %v262 = vld [vmem:[%s194 + $0x70] sm:$0xff]
        %v263 = vld [vmem:[%s194 + $0x78] sm:$0xff]
        %v264 = vld [vmem:[%s194 + $0x80] sm:$0xff]
        %v265 = vld [vmem:[%s194 + $0x88] sm:$0xff]
        %v266 = vld [vmem:[%s194 + $0x90] sm:$0xff]
        %v267 = vld [vmem:[%s194 + $0x98] sm:$0xff]
        %v268 = vld [vmem:[%s194 + $0xa0] sm:$0xff]
        %v269 = vld [vmem:[%s194 + $0xa8] sm:$0xff]
        %v270 = vld [vmem:[%s194 + $0xb0] sm:$0xff]
        %v271 = vld [vmem:[%s194 + $0xb8] sm:$0xff]
        %v272 = vld [vmem:[%s194 + $0xc0] sm:$0xff]
        %v273 = vld [vmem:[%s194 + $0xc8] sm:$0xff]
        %v274 = vld [vmem:[%s194 + $0xd0] sm:$0xff]
        %v275 = vld [vmem:[%s194 + $0xd8] sm:$0xff]
        %v276 = vld [vmem:[%s194 + $0xe0] sm:$0xff]
        %v277 = vld [vmem:[%s194 + $0xe8] sm:$0xff]
        %v278 = vld [vmem:[%s194 + $0xf0] sm:$0xff]
        %v279 = vld [vmem:[%s194 + $0xf8] sm:$0xff]
        %280 = vmatpush.msra.mxu0 %v278
        %281 = vmatpush.msra.mxu0 %v276
        %282 = vmatpush.msra.mxu0 %v274
        %283 = vmatpush.msra.mxu0 %v272
        %284 = vmatpush.msra.mxu0 %v270
        %285 = vmatpush.msra.mxu0 %v268
        %286 = vmatpush.msra.mxu0 %v266
        %287 = vmatpush.msra.mxu0 %v264
        %288 = vmatpush.msra.mxu0 %v262
        %289 = vmatpush.msra.mxu0 %v260
        %290 = vmatpush.msra.mxu0 %v258
        %291 = vmatpush.msra.mxu0 %v256
        %292 = vmatpush.msra.mxu0 %v254
        %293 = vmatpush.msra.mxu0 %v252
        %294 = vmatpush.msra.mxu0 %v250
        %295 = vmatpush.msra.mxu0 %v248
        %296 = vmatmul.f32.gmra.mxu0 %v247
        %v297 = vpop.f32.mrf.mxu0
        %v298 = vadd.f32 0.0, %v297
        %299 = vdwg.mxu0
        %300 = vmatpush.msra.mxu0 %v279
        %301 = vmatpush.msra.mxu0 %v277
        %302 = vmatpush.msra.mxu0 %v275
        %303 = vmatpush.msra.mxu0 %v273
        %304 = vmatpush.msra.mxu0 %v271
        %305 = vmatpush.msra.mxu0 %v269
        %306 = vmatpush.msra.mxu0 %v267
        %307 = vmatpush.msra.mxu0 %v265
        %308 = vmatpush.msra.mxu0 %v263
        %309 = vmatpush.msra.mxu0 %v261
        %310 = vmatpush.msra.mxu0 %v259
        %311 = vmatpush.msra.mxu0 %v257
        %312 = vmatpush.msra.mxu0 %v255
        %313 = vmatpush.msra.mxu0 %v253
        %314 = vmatpush.msra.mxu0 %v251
        %315 = vmatpush.msra.mxu0 %v249
        %316 = vmatmul.f32.gmra.mxu0 %v247
        %v317 = vpop.f32.mrf.mxu0
        %v318 = vadd.f32 0.0, %v317
        %319 = vdwg.mxu0
        %v322 = vrot.slane %v318, 7
        %v323 = vsel %vm222, %v298, %v322
        %v325 = vlaneseq
        %vm326 = vcmp.ge.s32.totalorder %v325, 0
        %vm327 = vcmp.lt.s32.totalorder %v325, 256
        %vm328 = vmand %vm326, %vm327
        %329 = vst.msk [vmem:[%s217] sm:$0x3] %vm328, %v323
        %s330 = sand.u32 %s95, 1
        %s331 = scalar_lea.sflag [#allocation4], %s330
        %s332 = sand.u32 %s95, 1
        %s333 = smul.addr %s332, 2
        %s334 = scalar_lea.vmem [#allocation8], %s333
        // Predicated region
        $region45: #{tpu_custom_call.1} parent=31 // pred_check
          %p335 = pneg %p105
        $region46: #{tpu_custom_call.1} parent=31 // pred_check_branch
          %337 = sbr.rel (%p335) target = $region48
        $region47: #{tpu_custom_call.1} parent=31 // pred_region
          %s338 = smul.u32 2, %s19
          %340 = vsyncadd %s331, 0
          %s341 = scalar_lea.hbm %s3, %s338
          %s343 = sshll.u32 %s334, 4
          %s344 = int_to_ptr.vmem [resolvable:$true] %s343
          %s345 = sshll.u32 %s341, 4
          %s346 = int_to_ptr.hbm [resolvable:$true] %s345
          %348 = dma.vmem_to_hbm [thread:$0]  %s344, 32, %s346, %s331
        $region48: #{tpu_custom_call.1} parent=31 // pred_fallthru
          _
      $region32: #{tpu_custom_call.1} parent=5 // pred_fallthru
        _
      %p349 = scmp.le.s32.totalorder 2, %s14
      // Predicated region
      $region49: #{tpu_custom_call.1} parent=5 // pred_check
        %p350 = pneg %p349
      $region50: #{tpu_custom_call.1} parent=5 // pred_check_branch
        %352 = sbr.rel (%p350) target = $region52
      $region51: #{tpu_custom_call.1} parent=5 // pred_region
        %s353 = ssub.s32 %s14, 2
        // Predicated region
        $region53: #{tpu_custom_call.1} parent=51 // pred_check
          %p354 = pneg %p111
        $region54: #{tpu_custom_call.1} parent=51 // pred_check_branch
          %356 = sbr.rel (%p354) target = $region56
        $region55: #{tpu_custom_call.1} parent=51 // pred_region
          %s357 = sand.u32 %s96, 1
          %s358 = scalar_lea.sflag [#allocation4], %s357
          %s359 = sand.u32 %s96, 1
          %s360 = smul.addr %s359, 2
          %s361 = scalar_lea.vmem [#allocation8], %s360
          %363 = dma.done %s358, 32
        $region56: #{tpu_custom_call.1} parent=51 // pred_fallthru
          _
      $region52: #{tpu_custom_call.1} parent=5 // pred_fallthru
        _
    $region6: #{tpu_custom_call.1} parent=1 // loop_footer
      %s18 = sadd.s32 1, %s14
    $region7: #{tpu_custom_call.1} parent=1 // loop_footer_branch
      %13 = sbr.rel target = $region3
    $region8: #{tpu_custom_call.1} parent=1 // loop_exit
      _
    %364 = vsyncpa [#allocation3], 1
    %s365 = scalar_lea.sflag [#allocation3], 1
    %366 = vsyncpa %s365, 1
    %367 = vsyncpa [#allocation6], 1
    %368 = vsyncpa [#allocation4], 1
    %s369 = scalar_lea.sflag [#allocation4], 1
    %370 = vsyncpa %s369, 1

</llo_original>
